<compile_context>
chip_gen: v5e
topology: v5e:2x2
jax: 0.10.0
libtpu: 0.0.40
codegen_flags: <defaults>
</compile_context>

<pallas_src>
import jax
import jax.numpy as jnp
from jax.experimental import pallas as pl
from jax.experimental.pallas import tpu as pltpu

HIDDEN = 128
LANE = 128          # batch lives on the lane axis; tile_b is a multiple of this
SUBLANE = 8         # fc2 output rows padded to a sublane multiple
NEG_FILL = -1e30    # padded-logit fill; exp(NEG_FILL - m) underflows to exactly 0


def policy_net_kernel(xT_ref, w1_ref, b1_ref, w2_ref, b2_ref, out_ref):
    # ---- fc1 + ReLU (transposed: batch on lanes) ----
    xT = xT_ref[...]                                                   # [n_obs, tile_b]
    h = jnp.dot(w1_ref[...], xT, preferred_element_type=jnp.float32)   # [128, tile_b]
    h = jnp.maximum(h + b1_ref[...], 0.0)                              # bias bcast over lanes

    # ---- fc2 (output rows padded to SUBLANE) ----
    logits = jnp.dot(w2_ref[...], h, preferred_element_type=jnp.float32)  # [n_act_pad, tile_b]
    logits = logits + b2_ref[...]                                         # padded rows ~= -1e30

    # ---- numerically stable softmax over the action (sublane) axis ----
    m = jnp.max(logits, axis=0, keepdims=True)        # padded rows never win
    e = jnp.exp(logits - m)                           # padded rows -> 0
    denom = jnp.sum(e, axis=0, keepdims=True)         # >= exp(0) for the winning row
    inv = pl.reciprocal(denom, approx=False)          # exact normalization (EUP)
    out_ref[...] = (e * inv).astype(out_ref.dtype)    # [n_act_pad, tile_b], lane-dense store


def _round_up(x, m):
    return ((x + m - 1) // m) * m


def policy_net_forward(x, w1, b1, w2, b2, *, tile_b=None, num_cores=1,
                       max_tile_b=4096):
    """PolicyNet forward.

    x  : [B, n_obs] f32
    w1 : [HIDDEN, n_obs]     (PyTorch fc1.weight layout)
    b1 : [HIDDEN]            (fc1.bias)
    w2 : [n_actions, HIDDEN] (PyTorch fc2.weight layout)
    b2 : [n_actions]         (fc2.bias)
    Returns softmax probabilities [B, n_actions] f32.

    num_cores=1 (v5e/v6e single TC) -> typical batches run as grid=(1,).
    num_cores=2 (v7x megacore)      -> two balanced batch tiles on the
                                       "parallel" grid axis.
    """
    B, n_obs = x.shape
    n_actions = w2.shape[0]
    assert w1.shape == (HIDDEN, n_obs) and b1.shape == (HIDDEN,)
    assert w2.shape == (n_actions, HIDDEN) and b2.shape == (n_actions,)

    # ---- batch-tile policy: fewest, balanced, lane-multiple tiles ----
    if tile_b is None:
        per_core = pl.cdiv(B, max(num_cores, 1))
        tile_b = min(_round_up(per_core, LANE), max_tile_b)
    assert tile_b % LANE == 0
    b_pad = _round_up(B, tile_b)

    # ---- transpose x so the batch is lane-dense; pad padded columns with 0 ----
    xT = x.T                                   # [n_obs, B] (tiny copy)
    if b_pad != B:
        xT = jnp.pad(xT, ((0, 0), (0, b_pad - B)))

    # ---- pad fc2 rows to a sublane multiple; zero weights, -1e30 bias ----
    n_act_pad = _round_up(n_actions, SUBLANE)
    w2p = jnp.pad(w2, ((0, n_act_pad - n_actions), (0, 0)))
    b2p = jnp.pad(b2.reshape(n_actions, 1),
                  ((0, n_act_pad - n_actions), (0, 0)),
                  constant_values=NEG_FILL)
    b1c = b1.reshape(HIDDEN, 1)

    grid = (b_pad // tile_b,)
    outT = pl.pallas_call(
        policy_net_kernel,
        out_shape=jax.ShapeDtypeStruct((n_act_pad, b_pad), jnp.float32),
        grid=grid,
        in_specs=[
            pl.BlockSpec((n_obs, tile_b), lambda i: (0, i)),      # batch-tiled input
            pl.BlockSpec((HIDDEN, n_obs), lambda i: (0, 0)),      # resident weights
            pl.BlockSpec((HIDDEN, 1), lambda i: (0, 0)),          # resident bias
            pl.BlockSpec((n_act_pad, HIDDEN), lambda i: (0, 0)),  # resident weights
            pl.BlockSpec((n_act_pad, 1), lambda i: (0, 0)),       # resident bias
        ],
        out_specs=pl.BlockSpec((n_act_pad, tile_b), lambda i: (0, i)),
        compiler_params=pltpu.CompilerParams(
            dimension_semantics=("parallel",)                     # megacore / both TCs
        ),
    )(xT, w1, b1c, w2p, b2p)

    # Cheap: slices/transposes only the narrow [n_act_pad, b_pad] buffer.
    return outT[:n_actions, :B].T


def init_params(key, n_observations, n_actions):
    """Deterministic synthetic init matching nn.Linear shapes (PyTorch layout)."""
    k1, k2, k3, k4 = jax.random.split(key, 4)
    bound1 = 1.0 / jnp.sqrt(n_observations)
    bound2 = 1.0 / jnp.sqrt(HIDDEN)
    w1 = jax.random.uniform(k1, (HIDDEN, n_observations), jnp.float32, -bound1, bound1)
    b1 = jax.random.uniform(k2, (HIDDEN,), jnp.float32, -bound1, bound1)
    w2 = jax.random.uniform(k3, (n_actions, HIDDEN), jnp.float32, -bound2, bound2)
    b2 = jax.random.uniform(k4, (n_actions,), jnp.float32, -bound2, bound2)
    return w1, b1, w2, b2


if __name__ == "__main__":
    # CartPole-like sizes: n_observations=4, n_actions=2.
    n_observations, n_actions = 4, 2

    key = jax.random.PRNGKey(0)
    kx1, kx2, kp = jax.random.split(key, 3)
    w1, b1, w2, b2 = init_params(kp, n_observations, n_actions)

    def ref_forward(x):
        h = jnp.maximum(x @ w1.T + b1, 0.0)
        return jax.nn.softmax(h @ w2.T + b2, axis=-1)

    # Small batch: single padded tile, grid=(1,).
    x_small = jax.random.normal(kx1, (64, n_observations), jnp.float32)
    probs = jax.block_until_ready(policy_net_forward(x_small, w1, b1, w2, b2))
    assert probs.shape == (64, n_actions)
    assert jnp.allclose(probs, ref_forward(x_small), atol=1e-4, rtol=1e-4)
    assert jnp.allclose(jnp.sum(probs, axis=-1), 1.0, atol=1e-4)

    # Larger, non-multiple batch; num_cores=2 exercises two balanced grid tiles
    # (the v7x megacore split) on any chip generation.
    x_big = jax.random.normal(kx2, (600, n_observations), jnp.float32)
    probs_big = jax.block_until_ready(
        policy_net_forward(x_big, w1, b1, w2, b2, num_cores=2)
    )
    assert probs_big.shape == (600, n_actions)
    assert jnp.allclose(probs_big, ref_forward(x_big), atol=1e-4, rtol=1e-4)
    assert jnp.allclose(jnp.sum(probs_big, axis=-1), 1.0, atol=1e-4)

    print("KERNEL_OK")
</pallas_src>

<mosaic_0001>
module attributes {stable_mosaic.version = 11 : i64} {
  func.func @policy_net_kernel(%arg0: i32, %arg1: memref<4x128xf32, #tpu.memory_space<vmem>>, %arg2: memref<128x4xf32, #tpu.memory_space<vmem>>, %arg3: memref<128x1xf32, #tpu.memory_space<vmem>>, %arg4: memref<8x128xf32, #tpu.memory_space<vmem>>, %arg5: memref<8x1xf32, #tpu.memory_space<vmem>>, %arg6: memref<8x128xf32, #tpu.memory_space<vmem>>) attributes {dimension_semantics = [#tpu.dimension_semantics<parallel>], iteration_bounds = array<i64: 1>, scalar_prefetch = 0 : i64, scratch_operands = 0 : i64, tpu.core_type = #tpu.core_type<tc>, window_params = [{transform_indices = @transform_0, window_bounds = array<i64: 4, 128>}, {pipeline_mode = #tpu.pipeline_mode<synchronous>, transform_indices = @transform_1, window_bounds = array<i64: 128, 4>}, {pipeline_mode = #tpu.pipeline_mode<synchronous>, transform_indices = @transform_2, window_bounds = array<i64: 128, 1>}, {pipeline_mode = #tpu.pipeline_mode<synchronous>, transform_indices = @transform_3, window_bounds = array<i64: 8, 128>}, {pipeline_mode = #tpu.pipeline_mode<synchronous>, transform_indices = @transform_4, window_bounds = array<i64: 8, 1>}, {transform_indices = @transform_5, window_bounds = array<i64: 8, 128>}]} {
    %c0 = arith.constant 0 : index
    %c0_0 = arith.constant 0 : index
    %0 = vector.load %arg1[%c0, %c0_0] : memref<4x128xf32, #tpu.memory_space<vmem>>, vector<4x128xf32>
    %c0_1 = arith.constant 0 : index
    %c0_2 = arith.constant 0 : index
    %1 = vector.load %arg2[%c0_1, %c0_2] : memref<128x4xf32, #tpu.memory_space<vmem>>, vector<128x4xf32>
    %cst = arith.constant dense<0.000000e+00> : vector<128x128xf32>
    %2 = tpu.matmul %1, %0, %cst {dimension_numbers = #tpu.dot_dimension_numbers<[1], [0], [0], [1], [0, 0, 1, 1], [], []>} : vector<128x4xf32>, vector<4x128xf32>, vector<128x128xf32> -> vector<128x128xf32>
    %c0_3 = arith.constant 0 : index
    %c0_4 = arith.constant 0 : index
    %3 = vector.load %arg3[%c0_3, %c0_4] : memref<128x1xf32, #tpu.memory_space<vmem>>, vector<128x1xf32>
    %4 = vector.broadcast %3 : vector<128x1xf32> to vector<128x128xf32>
    %5 = arith.addf %2, %4 : vector<128x128xf32>
    %cst_5 = arith.constant 0.000000e+00 : f32
    %6 = vector.broadcast %cst_5 : f32 to vector<128x128xf32>
    %7 = arith.maximumf %5, %6 : vector<128x128xf32>
    %c0_6 = arith.constant 0 : index
    %c0_7 = arith.constant 0 : index
    %8 = vector.load %arg4[%c0_6, %c0_7] : memref<8x128xf32, #tpu.memory_space<vmem>>, vector<8x128xf32>
    %cst_8 = arith.constant dense<0.000000e+00> : vector<8x128xf32>
    %9 = tpu.matmul %8, %7, %cst_8 {dimension_numbers = #tpu.dot_dimension_numbers<[1], [0], [0], [1], [0, 0, 1, 1], [], []>} : vector<8x128xf32>, vector<128x128xf32>, vector<8x128xf32> -> vector<8x128xf32>
    %c0_9 = arith.constant 0 : index
    %c0_10 = arith.constant 0 : index
    %10 = vector.load %arg5[%c0_9, %c0_10] : memref<8x1xf32, #tpu.memory_space<vmem>>, vector<8x1xf32>
    %11 = vector.broadcast %10 : vector<8x1xf32> to vector<8x128xf32>
    %12 = arith.addf %9, %11 : vector<8x128xf32>
    %cst_11 = arith.constant dense<0xFF800000> : vector<128xf32>
    %13 = vector.multi_reduction <maximumf>, %12, %cst_11 [0] : vector<8x128xf32> to vector<128xf32>
    %14 = vector.shape_cast %13 : vector<128xf32> to vector<1x128xf32>
    %15 = vector.broadcast %14 : vector<1x128xf32> to vector<8x128xf32>
    %16 = arith.subf %12, %15 : vector<8x128xf32>
    %17 = math.exp %16 : vector<8x128xf32>
    %cst_12 = arith.constant dense<0.000000e+00> : vector<128xf32>
    %18 = vector.multi_reduction <add>, %17, %cst_12 [0] : vector<8x128xf32> to vector<128xf32>
    %19 = vector.shape_cast %18 : vector<128xf32> to vector<1x128xf32>
    %20 = tpu.reciprocal %19 : vector<1x128xf32> -> vector<1x128xf32>
    %21 = vector.broadcast %20 : vector<1x128xf32> to vector<8x128xf32>
    %22 = arith.mulf %17, %21 : vector<8x128xf32>
    %c0_13 = arith.constant 0 : index
    %c0_14 = arith.constant 0 : index
    %23 = vector.load %arg6[%c0_13, %c0_14] : memref<8x128xf32, #tpu.memory_space<vmem>>, vector<8x128xf32>
    tpu.vector_store %arg6[%c0_13, %c0_14], %22 {strides = array<i32>} : memref<8x128xf32, #tpu.memory_space<vmem>>, vector<8x128xf32>,
    return
  }
  func.func @transform_0(%arg0: i32) -> (i32, i32) {
    %c0_i32 = arith.constant 0 : i32
    %c0_i32_0 = arith.constant 0 : i32
    return %c0_i32, %arg0 : i32, i32
  }
  func.func @transform_1(%arg0: i32) -> (i32, i32) {
    %c0_i32 = arith.constant 0 : i32
    %c0_i32_0 = arith.constant 0 : i32
    %c0_i32_1 = arith.constant 0 : i32
    return %c0_i32, %c0_i32_0 : i32, i32
  }
  func.func @transform_2(%arg0: i32) -> (i32, i32) {
    %c0_i32 = arith.constant 0 : i32
    %c0_i32_0 = arith.constant 0 : i32
    %c0_i32_1 = arith.constant 0 : i32
    return %c0_i32, %c0_i32_0 : i32, i32
  }
  func.func @transform_3(%arg0: i32) -> (i32, i32) {
    %c0_i32 = arith.constant 0 : i32
    %c0_i32_0 = arith.constant 0 : i32
    %c0_i32_1 = arith.constant 0 : i32
    return %c0_i32, %c0_i32_0 : i32, i32
  }
  func.func @transform_4(%arg0: i32) -> (i32, i32) {
    %c0_i32 = arith.constant 0 : i32
    %c0_i32_0 = arith.constant 0 : i32
    %c0_i32_1 = arith.constant 0 : i32
    return %c0_i32, %c0_i32_0 : i32, i32
  }
  func.func @transform_5(%arg0: i32) -> (i32, i32) {
    %c0_i32 = arith.constant 0 : i32
    %c0_i32_0 = arith.constant 0 : i32
    return %c0_i32, %arg0 : i32, i32
  }
}

</mosaic_0001>

<llo_original>
// kernel: tpu_custom_call.1
$region0: #{tpu_custom_call.1}
  #allocation0 [shape = 'u32[]', space=smem, size = 0x4, offset = 0x4, fixed_abs, tag = 'smem constant byte address 0x4 - core index']
  #allocation1 [shape = 'u32[72,128]{1,0:T(1,128)}', space=vmem, size = 0x9000, scoped, tag = 'internal scratch']
  %s0 = inlined_call_operand.vmem [shape: f32[4,128], index: 0, kind: input, shape index: {}]
  %s1 = inlined_call_operand.vmem [shape: f32[128,4], index: 1, kind: input, shape index: {}]
  %s2 = inlined_call_operand.vmem [shape: f32[128,1], index: 2, kind: input, shape index: {}]
  %s3 = inlined_call_operand.vmem [shape: f32[8,128], index: 3, kind: input, shape index: {}]
  %s4 = inlined_call_operand.vmem [shape: f32[8,1], index: 4, kind: input, shape index: {}]
  %s5 = inlined_call_operand.hbm [shape: f32[8,128], index: 5, kind: output, shape index: {}]
  %s6 = sld [smem:[#allocation0]]
  $region30: #{tpu_custom_call.1} parent=0
    _
  %s8 = ssub.s32 1, %s6
  %s9 = scalar_select 0, %s8, %s6
  $region1: #{tpu_custom_call.1} parent=0
    #allocation2 [shape = 'u8[4096]{0}', space=vmem, size = 0x1000, scoped, tag = 'output window, operand 0, single buffered']
    #allocation3 [shape = 's32[1]{0}', space=sflag, size = 0x4, scoped, tag = 'scoped memory for tpu_custom_call.1']
    %10 = vsyncpa [#allocation3], 0
    // Predicated region
    $region2: #{tpu_custom_call.1} parent=1 // pred_check
      _
    $region3: #{tpu_custom_call.1} parent=1 // pred_check_branch
      %12 = sbr.rel (0) target = $region5
    $region4: #{tpu_custom_call.1} parent=1 // pred_region
      _
    $region5: #{tpu_custom_call.1} parent=1 // pred_fallthru
      _
    // Predicated region
    $region6: #{tpu_custom_call.1} parent=1 // pred_check
      _
    $region7: #{tpu_custom_call.1} parent=1 // pred_check_branch
      %14 = sbr.rel (0) target = $region9
    $region8: #{tpu_custom_call.1} parent=1 // pred_region
      _
    $region9: #{tpu_custom_call.1} parent=1 // pred_fallthru
      _
    // Predicated region
    $region10: #{tpu_custom_call.1} parent=1 // pred_check
      _
    $region11: #{tpu_custom_call.1} parent=1 // pred_check_branch
      %16 = sbr.rel (0) target = $region13
    $region12: #{tpu_custom_call.1} parent=1 // pred_region
      _
    $region13: #{tpu_custom_call.1} parent=1 // pred_fallthru
      _
    // Predicated region
    $region14: #{tpu_custom_call.1} parent=1 // pred_check
      _
    $region15: #{tpu_custom_call.1} parent=1 // pred_check_branch
      %18 = sbr.rel (0) target = $region17
    $region16: #{tpu_custom_call.1} parent=1 // pred_region
      _
    $region17: #{tpu_custom_call.1} parent=1 // pred_fallthru
      _
    // Predicated region
    $region18: #{tpu_custom_call.1} parent=1 // pred_check
      _
    $region19: #{tpu_custom_call.1} parent=1 // pred_check_branch
      %20 = sbr.rel (0) target = $region21
    $region20: #{tpu_custom_call.1} parent=1 // pred_region
      _
    $region21: #{tpu_custom_call.1} parent=1 // pred_fallthru
      _
    %v21 = vld [vmem:[%s0] sm:$0xf]
    %v22 = vld [vmem:[%s1] sm:$0xff]
    %v23 = vld [vmem:[%s1 + $0x8] sm:$0xff]
    %v24 = vld [vmem:[%s1 + $0x10] sm:$0xff]
    %v25 = vld [vmem:[%s1 + $0x18] sm:$0xff]
    %v26 = vld [vmem:[%s1 + $0x20] sm:$0xff]
    %v27 = vld [vmem:[%s1 + $0x28] sm:$0xff]
    %v28 = vld [vmem:[%s1 + $0x30] sm:$0xff]
    %v29 = vld [vmem:[%s1 + $0x38] sm:$0xff]
    %v30 = vld [vmem:[%s1 + $0x40] sm:$0xff]
    %v31 = vld [vmem:[%s1 + $0x48] sm:$0xff]
    %v32 = vld [vmem:[%s1 + $0x50] sm:$0xff]
    %v33 = vld [vmem:[%s1 + $0x58] sm:$0xff]
    %v34 = vld [vmem:[%s1 + $0x60] sm:$0xff]
    %v35 = vld [vmem:[%s1 + $0x68] sm:$0xff]
    %v36 = vld [vmem:[%s1 + $0x70] sm:$0xff]
    %v37 = vld [vmem:[%s1 + $0x78] sm:$0xff]
    %v38 = vld [vmem:[%s2] sm:$0xff]
    %v39 = vld [vmem:[%s2 + $0x8] sm:$0xff]
    %v40 = vld [vmem:[%s2 + $0x10] sm:$0xff]
    %v41 = vld [vmem:[%s2 + $0x18] sm:$0xff]
    %v42 = vld [vmem:[%s2 + $0x20] sm:$0xff]
    %v43 = vld [vmem:[%s2 + $0x28] sm:$0xff]
    %v44 = vld [vmem:[%s2 + $0x30] sm:$0xff]
    %v45 = vld [vmem:[%s2 + $0x38] sm:$0xff]
    %v46 = vld [vmem:[%s2 + $0x40] sm:$0xff]
    %v47 = vld [vmem:[%s2 + $0x48] sm:$0xff]
    %v48 = vld [vmem:[%s2 + $0x50] sm:$0xff]
    %v49 = vld [vmem:[%s2 + $0x58] sm:$0xff]
    %v50 = vld [vmem:[%s2 + $0x60] sm:$0xff]
    %v51 = vld [vmem:[%s2 + $0x68] sm:$0xff]
    %v52 = vld [vmem:[%s2 + $0x70] sm:$0xff]
    %v53 = vld [vmem:[%s2 + $0x78] sm:$0xff]
    %55 = vset.pattern.permute.xlu0 0
    %56 = vperm.xlu0 %55, %v38
    %v57 = vpop.permute.xlu0 %56
    %60 = vset.pattern.permute.xlu0 0
    %61 = vperm.xlu0 %60, %v39
    %v62 = vpop.permute.xlu0 %61
    %65 = vset.pattern.permute.xlu0 0
    %66 = vperm.xlu0 %65, %v40
    %v67 = vpop.permute.xlu0 %66
    %70 = vset.pattern.permute.xlu0 0
    %71 = vperm.xlu0 %70, %v41
    %v72 = vpop.permute.xlu0 %71
    %75 = vset.pattern.permute.xlu0 0
    %76 = vperm.xlu0 %75, %v42
    %v77 = vpop.permute.xlu0 %76
    %80 = vset.pattern.permute.xlu0 0
    %81 = vperm.xlu0 %80, %v43
    %v82 = vpop.permute.xlu0 %81
    %85 = vset.pattern.permute.xlu0 0
    %86 = vperm.xlu0 %85, %v44
    %v87 = vpop.permute.xlu0 %86
    %90 = vset.pattern.permute.xlu0 0
    %91 = vperm.xlu0 %90, %v45
    %v92 = vpop.permute.xlu0 %91
    %95 = vset.pattern.permute.xlu0 0
    %96 = vperm.xlu0 %95, %v46
    %v97 = vpop.permute.xlu0 %96
    %100 = vset.pattern.permute.xlu0 0
    %101 = vperm.xlu0 %100, %v47
    %v102 = vpop.permute.xlu0 %101
    %105 = vset.pattern.permute.xlu0 0
    %106 = vperm.xlu0 %105, %v48
    %v107 = vpop.permute.xlu0 %106
    %110 = vset.pattern.permute.xlu0 0
    %111 = vperm.xlu0 %110, %v49
    %v112 = vpop.permute.xlu0 %111
    %115 = vset.pattern.permute.xlu0 0
    %116 = vperm.xlu0 %115, %v50
    %v117 = vpop.permute.xlu0 %116
    %120 = vset.pattern.permute.xlu0 0
    %121 = vperm.xlu0 %120, %v51
    %v122 = vpop.permute.xlu0 %121
    %125 = vset.pattern.permute.xlu0 0
    %126 = vperm.xlu0 %125, %v52
    %v127 = vpop.permute.xlu0 %126
    %130 = vset.pattern.permute.xlu0 0
    %131 = vperm.xlu0 %130, %v53
    %v132 = vpop.permute.xlu0 %131
    %vm134 = vcmask 31744
    %v136 = vsel %vm134, %v22, 0
    %v139 = vsel %vm134, %v23, 0
    %v142 = vsel %vm134, %v24, 0
    %v145 = vsel %vm134, %v25, 0
    %v148 = vsel %vm134, %v26, 0
    %v151 = vsel %vm134, %v27, 0
    %v154 = vsel %vm134, %v28, 0
    %v157 = vsel %vm134, %v29, 0
    %v160 = vsel %vm134, %v30, 0
    %v163 = vsel %vm134, %v31, 0
    %v166 = vsel %vm134, %v32, 0
    %v169 = vsel %vm134, %v33, 0
    %v172 = vsel %vm134, %v34, 0
    %v175 = vsel %vm134, %v35, 0
    %v178 = vsel %vm134, %v36, 0
    %v181 = vsel %vm134, %v37, 0
    %vm183 = vcmask 1043456
    %v185 = vsel %vm183, %v21, 0
    %187 = vmatpush.msra.mxu0 0.0
    %188 = vmatpush.msra.mxu0 0.0
    %189 = vmatpush.msra.mxu0 0.0
    %190 = vmatpush.msra.mxu0 0.0
    %191 = vmatpush.msra.mxu0 0.0
    %192 = vmatpush.msra.mxu0 0.0
    %193 = vmatpush.msra.mxu0 0.0
    %194 = vmatpush.msra.mxu0 0.0
    %195 = vmatpush.msra.mxu0 0.0
    %196 = vmatpush.msra.mxu0 0.0
    %197 = vmatpush.msra.mxu0 0.0
    %198 = vmatpush.msra.mxu0 0.0
    %199 = vmatpush.msra.mxu0 0.0
    %200 = vmatpush.msra.mxu0 0.0
    %201 = vmatpush.msra.mxu0 0.0
    %202 = vmatpush.msra.mxu0 %v185
    %203 = vmatmul.f32.gmra.mxu0 %v136
    %v204 = vpop.f32.mrf.mxu0
    %v205 = vadd.f32 %v57, %v204
    %206 = vmatmul.f32.gmra.mxu0 %v139
    %v207 = vpop.f32.mrf.mxu0
    %v208 = vadd.f32 %v62, %v207
    %209 = vmatmul.f32.gmra.mxu0 %v142
    %v210 = vpop.f32.mrf.mxu0
    %v211 = vadd.f32 %v67, %v210
    %212 = vmatmul.f32.gmra.mxu0 %v145
    %v213 = vpop.f32.mrf.mxu0
    %v214 = vadd.f32 %v72, %v213
    %215 = vmatmul.f32.gmra.mxu0 %v148
    %v216 = vpop.f32.mrf.mxu0
    %v217 = vadd.f32 %v77, %v216
    %218 = vmatmul.f32.gmra.mxu0 %v151
    %v219 = vpop.f32.mrf.mxu0
    %v220 = vadd.f32 %v82, %v219
    %221 = vmatmul.f32.gmra.mxu0 %v154
    %v222 = vpop.f32.mrf.mxu0
    %v223 = vadd.f32 %v87, %v222
    %224 = vmatmul.f32.gmra.mxu0 %v157
    %v225 = vpop.f32.mrf.mxu0
    %v226 = vadd.f32 %v92, %v225
    %227 = vmatmul.f32.gmra.mxu0 %v160
    %v228 = vpop.f32.mrf.mxu0
    %v229 = vadd.f32 %v97, %v228
    %230 = vmatmul.f32.gmra.mxu0 %v163
    %v231 = vpop.f32.mrf.mxu0
    %v232 = vadd.f32 %v102, %v231
    %233 = vmatmul.f32.gmra.mxu0 %v166
    %v234 = vpop.f32.mrf.mxu0
    %v235 = vadd.f32 %v107, %v234
    %236 = vmatmul.f32.gmra.mxu0 %v169
    %v237 = vpop.f32.mrf.mxu0
    %v238 = vadd.f32 %v112, %v237
    %239 = vmatmul.f32.gmra.mxu0 %v172
    %v240 = vpop.f32.mrf.mxu0
    %v241 = vadd.f32 %v117, %v240
    %242 = vmatmul.f32.gmra.mxu0 %v175
    %v243 = vpop.f32.mrf.mxu0
    %v244 = vadd.f32 %v122, %v243
    %245 = vmatmul.f32.gmra.mxu0 %v178
    %v246 = vpop.f32.mrf.mxu0
    %v247 = vadd.f32 %v127, %v246
    %248 = vmatmul.f32.gmra.mxu0 %v181
    %v249 = vpop.f32.mrf.mxu0
    %v250 = vadd.f32 %v132, %v249
    %251 = vdwg.mxu0
    %v252 = vmax.f32 %v205, 0.0
    %v253 = vmax.f32 %v208, 0.0
    %v254 = vmax.f32 %v211, 0.0
    %v255 = vmax.f32 %v214, 0.0
    %v256 = vmax.f32 %v217, 0.0
    %v257 = vmax.f32 %v220, 0.0
    %v258 = vmax.f32 %v223, 0.0
    %v259 = vmax.f32 %v226, 0.0
    %v260 = vmax.f32 %v229, 0.0
    %v261 = vmax.f32 %v232, 0.0
    %v262 = vmax.f32 %v235, 0.0
    %v263 = vmax.f32 %v238, 0.0
    %v264 = vmax.f32 %v241, 0.0
    %v265 = vmax.f32 %v244, 0.0
    %v266 = vmax.f32 %v247, 0.0
    %v267 = vmax.f32 %v250, 0.0
    %v268 = vld [vmem:[%s3] sm:$0xff]
    %v269 = vld [vmem:[%s4] sm:$0xff]
    %271 = vset.pattern.permute.xlu0 0
    %272 = vperm.xlu0 %271, %v269
    %v273 = vpop.permute.xlu0 %272
    %275 = vmatpush.msra.mxu0 %v267
    %276 = vmatpush.msra.mxu0 %v266
    %277 = vmatpush.msra.mxu0 %v265
    %278 = vmatpush.msra.mxu0 %v264
    %279 = vmatpush.msra.mxu0 %v263
    %280 = vmatpush.msra.mxu0 %v262
    %281 = vmatpush.msra.mxu0 %v261
    %282 = vmatpush.msra.mxu0 %v260
    %283 = vmatpush.msra.mxu0 %v259
    %284 = vmatpush.msra.mxu0 %v258
    %285 = vmatpush.msra.mxu0 %v257
    %286 = vmatpush.msra.mxu0 %v256
    %287 = vmatpush.msra.mxu0 %v255
    %288 = vmatpush.msra.mxu0 %v254
    %289 = vmatpush.msra.mxu0 %v253
    %290 = vmatpush.msra.mxu0 %v252
    %291 = vmatmul.f32.gmra.mxu0 %v268
    %v292 = vpop.f32.mrf.mxu0
    %v293 = vadd.f32 %v273, %v292
    %294 = vdwg.mxu0
    %v295 = vrot.slane %v293, 4
    %v296 = vmax.f32 %v293, %v295
    %v297 = vrot.slane %v296, 2
    %v298 = vmax.f32 %v296, %v297
    %v299 = vrot.slane %v298, 1
    %v300 = vmax.f32 %v298, %v299
    %v301 = vsub.f32 %v293, %v300
    %v302 = vmul.f32 %v301, 1.442695
    %v303 = vpow.pop %v302
    %v304 = vrot.slane %v303, 4
    %v305 = vadd.f32 %v303, %v304
    %v306 = vrot.slane %v305, 2
    %v307 = vadd.f32 %v305, %v306
    %v308 = vrot.slane %v307, 1
    %v309 = vadd.f32 %v307, %v308
    %v310 = vrcp.pop %v309
    %v311 = vmul.f32 %v309, %v310
    %v312 = vsub.f32 1.0, %v311
    %v313 = vmul.f32 %v310, %v312
    %v314 = vadd.f32 %v310, %v313
    %vm315 = vweird.f32 %v309
    %vm316 = vweird.f32 %v310
    %vm317 = vmor %vm315, %vm316
    %v318 = vsel %vm317, %v310, %v314
    %v319 = vand.u32 2147483647, %v309
    %vm320 = vcmp.eq.f32.partialorder %v319, 8.507059e+37
    %v321 = vand.u32 %v309, 2147483648
    %v322 = vor.u32 1.1754944e-38, %v321
    %v323 = vsel %vm320, %v322, %v318
    %v324 = vmul.f32 %v303, %v323
    %325 = vst [vmem:[#allocation2] sm:$0xff] %v324
    // Predicated region
    $region22: #{tpu_custom_call.1} parent=1 // pred_check
      _
    $region23: #{tpu_custom_call.1} parent=1 // pred_check_branch
      %327 = sbr.rel (0) target = $region25
    $region24: #{tpu_custom_call.1} parent=1 // pred_region
      %329 = vsyncadd [#allocation3], 0
      %s331 = sshll.u32 [#allocation2], 4
      %s332 = int_to_ptr.vmem [resolvable:$true] %s331
      %s333 = sshll.u32 %s5, 4
      %s334 = int_to_ptr.hbm [resolvable:$true] %s333
      %336 = dma.vmem_to_hbm [thread:$0]  %s332, 128, %s334, [#allocation3]
    $region25: #{tpu_custom_call.1} parent=1 // pred_fallthru
      _
    // Predicated region
    $region26: #{tpu_custom_call.1} parent=1 // pred_check
      _
    $region27: #{tpu_custom_call.1} parent=1 // pred_check_branch
      %338 = sbr.rel (0) target = $region29
    $region28: #{tpu_custom_call.1} parent=1 // pred_region
      %340 = dma.done [#allocation3], 128
    $region29: #{tpu_custom_call.1} parent=1 // pred_fallthru
      _
    %341 = vsyncpa [#allocation3], 1

</llo_original>
